<compile_context>
chip_gen: v5e
topology: v5e:2x2
jax: 0.10.0
libtpu: 0.0.40
codegen_flags: <defaults>
</compile_context>

<pallas_src>
import functools

import jax
import jax.numpy as jnp
from jax.experimental import pallas as pl
from jax.experimental.pallas import tpu as pltpu


def _round_up(x, m):
    return ((x + m - 1) // m) * m


def _cdiv(a, b):
    return (a + b - 1) // b


def _actor_kernel(obs_ref, act_ref, w_ref, b_ref, logits_ref, logp_ref,
                  *, obs_dim, hidden, act_dim, r_w2, r_w3):
    """One batch tile: fused 3-layer MLP + Categorical.log_prob, lane-major outputs."""
    mm = w_ref.dtype                          # matmul operand dtype (f32 or bf16)
    f32 = jnp.float32

    x = obs_ref[...]                          # (bt, obs_dim) mm

    # Layer 1: Linear(obs_dim, 64) + Tanh   (f32 accumulation / elementwise)
    w1 = w_ref[0:obs_dim, 0:hidden]
    b1 = b_ref[0:1, 0:hidden]                 # (1, hidden) f32, exact
    h1 = jnp.tanh(jnp.dot(x, w1, preferred_element_type=f32) + b1)

    # Layer 2: Linear(64, 64) + Tanh
    w2 = w_ref[r_w2:r_w2 + hidden, 0:hidden]
    b2 = b_ref[1:2, 0:hidden]
    h2 = jnp.tanh(jnp.dot(h1.astype(mm), w2, preferred_element_type=f32) + b2)

    # Layer 3: Linear(64, act_dim) + Identity, computed over the full lane-padded
    # width W (zero weights / zero bias beyond act_dim) so the transpose below is
    # a perfectly (8,128)-tiled f32 relayout.
    w3 = w_ref[r_w3:r_w3 + hidden, :]         # (hidden, W)
    b3 = b_ref[2:3, :]                        # (1, W) f32
    logits_full = jnp.dot(h2.astype(mm), w3, preferred_element_type=f32) + b3  # (bt, W)

    # Move batch to the lane axis: dense stores; softmax over the small sublane axis.
    logits_t = logits_full.T                  # (W, bt)
    logits = logits_t[0:act_dim, :]           # (act_dim, bt)

    # Categorical.log_prob(act) = logits[act] - logsumexp(logits)   (class axis = sublanes)
    m = jnp.max(logits, axis=0, keepdims=True)                      # (1, bt)
    lse = m + jnp.log(jnp.sum(jnp.exp(logits - m), axis=0, keepdims=True))
    act = act_ref[...]                                              # (1, bt) int32
    row = jax.lax.broadcasted_iota(jnp.int32, logits.shape, 0)
    chosen = jnp.sum(jnp.where(row == act, logits, 0.0), axis=0, keepdims=True)

    logits_ref[...] = logits.astype(logits_ref.dtype)               # dense (act_dim, bt) store
    logp_ref[...] = chosen - lse                                    # dense (1, bt) store


def pack_weights(params, *, dtype=jnp.float32):
    """Pack w1,w2,w3 into one sublane-aligned (R, W) slab (single DMA, VMEM-resident)."""
    w1, _, w2, _, w3, _ = params
    obs_dim, hidden = w1.shape
    act_dim = w3.shape[1]
    align = 16 if jnp.dtype(dtype).itemsize < 4 else 8   # bf16 packs 16 rows per sublane tile
    W = _round_up(max(hidden, act_dim), 128)             # lane-padded; pad columns are zero
    r_w2 = _round_up(obs_dim, align)
    r_w3 = r_w2 + _round_up(hidden, align)
    R = r_w3 + _round_up(hidden, align)
    slab = jnp.zeros((R, W), jnp.float32)
    slab = slab.at[0:obs_dim, 0:hidden].set(w1)
    slab = slab.at[r_w2:r_w2 + hidden, 0:hidden].set(w2)
    slab = slab.at[r_w3:r_w3 + hidden, 0:act_dim].set(w3)
    return slab.astype(dtype), r_w2, r_w3


def pack_biases(params):
    """Pack b1,b2,b3 into a tiny (8, W) f32 slab (biases stay exact on the bf16 path)."""
    w1, b1, _, b2, w3, b3 = params
    hidden = w1.shape[1]
    act_dim = w3.shape[1]
    W = _round_up(max(hidden, act_dim), 128)
    slab = jnp.zeros((8, W), jnp.float32)
    slab = slab.at[0, 0:hidden].set(b1.reshape(-1))
    slab = slab.at[1, 0:hidden].set(b2.reshape(-1))
    slab = slab.at[2, 0:act_dim].set(b3.reshape(-1))
    return slab


def actor_forward(obs, act, params, *, block_b=2048, matmul_dtype=jnp.bfloat16,
                  logits_dtype=jnp.float32):
    """obs: (B, obs_dim) f32, act: (B,) int. Returns (logits (B, act_dim), logp_a (B,) f32)."""
    w1, _, _, _, w3, _ = params
    B, obs_dim = obs.shape
    hidden = w1.shape[1]
    act_dim = w3.shape[1]

    # Batch tiling: tiles are multiples of 128 (lane dim of the outputs).  Prefer a
    # single big tile; if the whole batch would be one tile but is >= 256 rows,
    # split into two balanced tiles so both v7x TensorCores get work.
    B128 = _round_up(B, 128)
    bt = min(_round_up(block_b, 128), B128)
    n_tiles = _cdiv(B128, bt)
    if n_tiles == 1 and B128 >= 256:
        bt = _round_up(_cdiv(B128, 2), 128)
        n_tiles = _cdiv(B128, bt)
    B_pad = bt * n_tiles

    obs_p = obs.astype(matmul_dtype)
    act_p = act.reshape(1, B).astype(jnp.int32)        # lane-dense action row
    if B_pad != B:
        obs_p = jnp.pad(obs_p, ((0, B_pad - B), (0, 0)))
        act_p = jnp.pad(act_p, ((0, 0), (0, B_pad - B)))

    w_slab, r_w2, r_w3 = pack_weights(params, dtype=matmul_dtype)
    b_slab = pack_biases(params)
    R, W = w_slab.shape

    kernel = functools.partial(
        _actor_kernel, obs_dim=obs_dim, hidden=hidden, act_dim=act_dim,
        r_w2=r_w2, r_w3=r_w3)

    in_bytes = (obs_p.size * obs_p.dtype.itemsize + act_p.size * 4
                + w_slab.size * w_slab.dtype.itemsize + b_slab.size * 4)
    out_bytes = B_pad * act_dim * jnp.dtype(logits_dtype).itemsize + B_pad * 4
    cost = pl.CostEstimate(
        flops=2 * B_pad * (obs_dim * hidden + hidden * hidden + hidden * W),
        transcendentals=B_pad * (2 * hidden + act_dim + 1),
        bytes_accessed=in_bytes + out_bytes,
    )

    logits_t, logp = pl.pallas_call(
        kernel,
        grid=(n_tiles,),
        in_specs=[
            pl.BlockSpec((bt, obs_dim), lambda i: (i, 0)),     # batch tile of obs
            pl.BlockSpec((1, bt), lambda i: (0, i)),           # lane-dense actions
            pl.BlockSpec((R, W), lambda i: (0, 0)),            # weight slab: constant block
            pl.BlockSpec((8, W), lambda i: (0, 0)),            # f32 bias slab: constant block
        ],
        out_specs=[
            pl.BlockSpec((act_dim, bt), lambda i: (0, i)),     # lane-major logits
            pl.BlockSpec((1, bt), lambda i: (0, i)),           # lane-major log-prob
        ],
        out_shape=[
            jax.ShapeDtypeStruct((act_dim, B_pad), logits_dtype),
            jax.ShapeDtypeStruct((1, B_pad), jnp.float32),
        ],
        compiler_params=pltpu.CompilerParams(
            dimension_semantics=("parallel",),   # batch tiles shard across v7x's 2 TCs
            vmem_limit_bytes=32 * 1024 * 1024,
        ),
        cost_estimate=cost,
    )(obs_p, act_p, w_slab, b_slab)

    logits = logits_t[:, :B].T          # back to (B, act_dim) row-major (tiny wrapper transpose)
    logp = logp[0, :B]
    return logits, logp


def init_params(key, obs_dim, hidden, act_dim):
    """Deterministic init mimicking torch.nn.Linear default U(-1/sqrt(fan_in), 1/sqrt(fan_in))."""
    ks = jax.random.split(key, 6)

    def lin(kw, kb, fan_in, fan_out):
        bound = 1.0 / jnp.sqrt(jnp.float32(fan_in))
        w = jax.random.uniform(kw, (fan_in, fan_out), jnp.float32, -bound, bound)
        b = jax.random.uniform(kb, (1, fan_out), jnp.float32, -bound, bound)
        return w, b

    w1, b1 = lin(ks[0], ks[1], obs_dim, hidden)
    w2, b2 = lin(ks[2], ks[3], hidden, hidden)
    w3, b3 = lin(ks[4], ks[5], hidden, act_dim)
    return (w1, b1, w2, b2, w3, b3)


def actor_reference(obs, act, params):
    w1, b1, w2, b2, w3, b3 = params
    h1 = jnp.tanh(obs @ w1 + b1)
    h2 = jnp.tanh(h1 @ w2 + b2)
    logits = h2 @ w3 + b3
    lse = jax.scipy.special.logsumexp(logits, axis=-1)
    logp = jnp.take_along_axis(logits, act[:, None], axis=-1)[:, 0] - lse
    return logits, logp


# TODO(synk): the torch.distributions.Categorical object itself (sampling, entropy) has no
# Pallas equivalent here; the kernel returns logits + log_prob(act), matching forward().

if __name__ == "__main__":
    # Small demo shapes consistent with the module (hidden fixed at 64 by the Sequential).
    B, OBS_DIM, HIDDEN, ACT_DIM = 20, 32, 64, 8

    key = jax.random.PRNGKey(0)
    k_obs, k_act, k_par = jax.random.split(key, 3)

    obs = jax.random.normal(k_obs, (B, OBS_DIM), dtype=jnp.float32)
    act = jax.random.randint(k_act, (B,), 0, ACT_DIM, dtype=jnp.int32)
    params = init_params(k_par, OBS_DIM, HIDDEN, ACT_DIM)

    ref_logits, ref_logp = actor_reference(obs, act, params)

    # Exact-semantics path (f32 matmul operands), single 128-row tile.
    logits32, logp32 = actor_forward(obs, act, params, matmul_dtype=jnp.float32)
    jax.block_until_ready((logits32, logp32))
    assert logits32.shape == (B, ACT_DIM) and logp32.shape == (B,)
    assert jnp.allclose(logits32, ref_logits, atol=1e-5, rtol=1e-5)
    assert jnp.allclose(logp32, ref_logp, atol=1e-5, rtol=1e-5)

    # Fast path (bf16 matmul operands, exact f32 biases / accumulation / elementwise).
    logits16, logp16 = actor_forward(obs, act, params, matmul_dtype=jnp.bfloat16)
    jax.block_until_ready((logits16, logp16))
    assert jnp.allclose(logits16, ref_logits, atol=2e-2, rtol=2e-2)
    assert jnp.allclose(logp16, ref_logp, atol=2e-2, rtol=2e-2)

    # Multi-tile path: exercises >=2 grid steps (and the two-TensorCore split logic).
    B2 = 300
    k2o, k2a = jax.random.split(jax.random.PRNGKey(1), 2)
    obs2 = jax.random.normal(k2o, (B2, OBS_DIM), dtype=jnp.float32)
    act2 = jax.random.randint(k2a, (B2,), 0, ACT_DIM, dtype=jnp.int32)
    ref2_logits, ref2_logp = actor_reference(obs2, act2, params)
    l2, p2 = actor_forward(obs2, act2, params, block_b=256, matmul_dtype=jnp.float32)
    jax.block_until_ready((l2, p2))
    assert jnp.allclose(l2, ref2_logits, atol=1e-5, rtol=1e-5)
    assert jnp.allclose(p2, ref2_logp, atol=1e-5, rtol=1e-5)

    print("KERNEL_OK")
</pallas_src>

<mosaic_0001>
module attributes {stable_mosaic.version = 11 : i64} {
  func.func @_actor_kernel(%arg0: i32, %arg1: memref<128x32xf32, #tpu.memory_space<vmem>>, %arg2: memref<1x128xi32, #tpu.memory_space<vmem>>, %arg3: memref<160x128xf32, #tpu.memory_space<vmem>>, %arg4: memref<8x128xf32, #tpu.memory_space<vmem>>, %arg5: memref<8x128xf32, #tpu.memory_space<vmem>>, %arg6: memref<1x128xf32, #tpu.memory_space<vmem>>) attributes {dimension_semantics = [#tpu.dimension_semantics<parallel>], iteration_bounds = array<i64: 1>, scalar_prefetch = 0 : i64, scratch_operands = 0 : i64, tpu.core_type = #tpu.core_type<tc>, window_params = [{transform_indices = @transform_0, window_bounds = array<i64: 128, 32>}, {transform_indices = @transform_1, window_bounds = array<i64: 1, 128>}, {pipeline_mode = #tpu.pipeline_mode<synchronous>, transform_indices = @transform_2, window_bounds = array<i64: 160, 128>}, {pipeline_mode = #tpu.pipeline_mode<synchronous>, transform_indices = @transform_3, window_bounds = array<i64: 8, 128>}, {transform_indices = @transform_4, window_bounds = array<i64: 8, 128>}, {transform_indices = @transform_5, window_bounds = array<i64: 1, 128>}]} {
    %c0 = arith.constant 0 : index
    %c0_0 = arith.constant 0 : index
    %0 = vector.load %arg1[%c0, %c0_0] : memref<128x32xf32, #tpu.memory_space<vmem>>, vector<128x32xf32>
    %c0_1 = arith.constant 0 : index
    %c0_2 = arith.constant 0 : index
    %1 = vector.load %arg3[%c0_1, %c0_2] : memref<160x128xf32, #tpu.memory_space<vmem>>, vector<32x64xf32>
    %c0_3 = arith.constant 0 : index
    %c0_4 = arith.constant 0 : index
    %2 = vector.load %arg4[%c0_3, %c0_4] : memref<8x128xf32, #tpu.memory_space<vmem>>, vector<1x64xf32>
    %cst = arith.constant dense<0.000000e+00> : vector<128x64xf32>
    %3 = tpu.matmul %0, %1, %cst {dimension_numbers = #tpu.dot_dimension_numbers<[1], [0], [0], [1], [0, 0, 1, 1], [], []>} : vector<128x32xf32>, vector<32x64xf32>, vector<128x64xf32> -> vector<128x64xf32>
    %4 = vector.broadcast %2 : vector<1x64xf32> to vector<128x64xf32>
    %5 = arith.addf %3, %4 : vector<128x64xf32>
    %6 = math.tanh %5 : vector<128x64xf32>
    %c32 = arith.constant 32 : index
    %c0_5 = arith.constant 0 : index
    %7 = vector.load %arg3[%c32, %c0_5] : memref<160x128xf32, #tpu.memory_space<vmem>>, vector<64x64xf32>
    %c1 = arith.constant 1 : index
    %c0_6 = arith.constant 0 : index
    %8 = vector.load %arg4[%c1, %c0_6] : memref<8x128xf32, #tpu.memory_space<vmem>>, vector<1x64xf32>
    %cst_7 = arith.constant dense<0.000000e+00> : vector<128x64xf32>
    %9 = tpu.matmul %6, %7, %cst_7 {dimension_numbers = #tpu.dot_dimension_numbers<[1], [0], [0], [1], [0, 0, 1, 1], [], []>} : vector<128x64xf32>, vector<64x64xf32>, vector<128x64xf32> -> vector<128x64xf32>
    %10 = vector.broadcast %8 : vector<1x64xf32> to vector<128x64xf32>
    %11 = arith.addf %9, %10 : vector<128x64xf32>
    %12 = math.tanh %11 : vector<128x64xf32>
    %c96 = arith.constant 96 : index
    %c0_8 = arith.constant 0 : index
    %13 = vector.load %arg3[%c96, %c0_8] : memref<160x128xf32, #tpu.memory_space<vmem>>, vector<64x128xf32>
    %c2 = arith.constant 2 : index
    %c0_9 = arith.constant 0 : index
    %14 = vector.load %arg4[%c2, %c0_9] : memref<8x128xf32, #tpu.memory_space<vmem>>, vector<1x128xf32>
    %cst_10 = arith.constant dense<0.000000e+00> : vector<128x128xf32>
    %15 = tpu.matmul %12, %13, %cst_10 {dimension_numbers = #tpu.dot_dimension_numbers<[1], [0], [0], [1], [0, 0, 1, 1], [], []>} : vector<128x64xf32>, vector<64x128xf32>, vector<128x128xf32> -> vector<128x128xf32>
    %16 = vector.broadcast %14 : vector<1x128xf32> to vector<128x128xf32>
    %17 = arith.addf %15, %16 : vector<128x128xf32>
    %18 = tpu.transpose %17, [1, 0] : vector<128x128xf32> -> vector<128x128xf32>
    %19 = vector.extract_strided_slice %18 {offsets = [0, 0], sizes = [8, 128], strides = [1, 1]} : vector<128x128xf32> to vector<8x128xf32>
    %cst_11 = arith.constant dense<0xFF800000> : vector<128xf32>
    %20 = vector.multi_reduction <maximumf>, %19, %cst_11 [0] : vector<8x128xf32> to vector<128xf32>
    %21 = vector.shape_cast %20 : vector<128xf32> to vector<1x128xf32>
    %22 = vector.broadcast %21 : vector<1x128xf32> to vector<8x128xf32>
    %23 = arith.subf %19, %22 : vector<8x128xf32>
    %24 = math.exp %23 : vector<8x128xf32>
    %cst_12 = arith.constant dense<0.000000e+00> : vector<128xf32>
    %25 = vector.multi_reduction <add>, %24, %cst_12 [0] : vector<8x128xf32> to vector<128xf32>
    %26 = vector.shape_cast %25 : vector<128xf32> to vector<1x128xf32>
    %27 = math.log %26 : vector<1x128xf32>
    %28 = arith.addf %21, %27 : vector<1x128xf32>
    %c0_13 = arith.constant 0 : index
    %c0_14 = arith.constant 0 : index
    %29 = vector.load %arg2[%c0_13, %c0_14] : memref<1x128xi32, #tpu.memory_space<vmem>>, vector<1x128xi32>
    %30 = tpu.iota {dimensions = array<i32: 0>} : vector<8x128xi32>
    %31 = vector.broadcast %29 : vector<1x128xi32> to vector<8x128xi32>
    %32 = arith.cmpi eq, %30, %31 : vector<8x128xi32>
    %cst_15 = arith.constant 0.000000e+00 : f32
    %33 = vector.broadcast %cst_15 : f32 to vector<8x128xf32>
    %34 = arith.select %32, %19, %33 : vector<8x128xi1>, vector<8x128xf32>
    %cst_16 = arith.constant dense<0.000000e+00> : vector<128xf32>
    %35 = vector.multi_reduction <add>, %34, %cst_16 [0] : vector<8x128xf32> to vector<128xf32>
    %36 = vector.shape_cast %35 : vector<128xf32> to vector<1x128xf32>
    %c0_17 = arith.constant 0 : index
    %c0_18 = arith.constant 0 : index
    %37 = vector.load %arg5[%c0_17, %c0_18] : memref<8x128xf32, #tpu.memory_space<vmem>>, vector<8x128xf32>
    tpu.vector_store %arg5[%c0_17, %c0_18], %19 {strides = array<i32>} : memref<8x128xf32, #tpu.memory_space<vmem>>, vector<8x128xf32>,
    %38 = arith.subf %36, %28 : vector<1x128xf32>
    %c0_19 = arith.constant 0 : index
    %c0_20 = arith.constant 0 : index
    %39 = vector.load %arg6[%c0_19, %c0_20] : memref<1x128xf32, #tpu.memory_space<vmem>>, vector<1x128xf32>
    tpu.vector_store %arg6[%c0_19, %c0_20], %38 {strides = array<i32>} : memref<1x128xf32, #tpu.memory_space<vmem>>, vector<1x128xf32>,
    return
  }
  func.func @transform_0(%arg0: i32) -> (i32, i32) {
    %c0_i32 = arith.constant 0 : i32
    %c0_i32_0 = arith.constant 0 : i32
    return %arg0, %c0_i32 : i32, i32
  }
  func.func @transform_1(%arg0: i32) -> (i32, i32) {
    %c0_i32 = arith.constant 0 : i32
    %c0_i32_0 = arith.constant 0 : i32
    return %c0_i32, %arg0 : i32, i32
  }
  func.func @transform_2(%arg0: i32) -> (i32, i32) {
    %c0_i32 = arith.constant 0 : i32
    %c0_i32_0 = arith.constant 0 : i32
    %c0_i32_1 = arith.constant 0 : i32
    return %c0_i32, %c0_i32_0 : i32, i32
  }
  func.func @transform_3(%arg0: i32) -> (i32, i32) {
    %c0_i32 = arith.constant 0 : i32
    %c0_i32_0 = arith.constant 0 : i32
    %c0_i32_1 = arith.constant 0 : i32
    return %c0_i32, %c0_i32_0 : i32, i32
  }
  func.func @transform_4(%arg0: i32) -> (i32, i32) {
    %c0_i32 = arith.constant 0 : i32
    %c0_i32_0 = arith.constant 0 : i32
    return %c0_i32, %arg0 : i32, i32
  }
  func.func @transform_5(%arg0: i32) -> (i32, i32) {
    %c0_i32 = arith.constant 0 : i32
    %c0_i32_0 = arith.constant 0 : i32
    return %c0_i32, %arg0 : i32, i32
  }
}

</mosaic_0001>

<llo_original>
// kernel: tpu_custom_call.1
$region0: #{tpu_custom_call.1}
  #allocation0 [shape = 'u32[]', space=smem, size = 0x4, offset = 0x4, fixed_abs, tag = 'smem constant byte address 0x4 - core index']
  #allocation1 [shape = 'u32[72,128]{1,0:T(1,128)}', space=vmem, size = 0x9000, scoped, tag = 'internal scratch']
  %s0 = inlined_call_operand.vmem [shape: f32[128,32], index: 0, kind: input, shape index: {}]
  %s1 = inlined_call_operand.vmem [shape: s32[1,128], index: 1, kind: input, shape index: {}]
  %s2 = inlined_call_operand.vmem [shape: f32[160,128], index: 2, kind: input, shape index: {}]
  %s3 = inlined_call_operand.hbm [shape: f32[8,128], index: 3, kind: input, shape index: {}]
  %s4 = inlined_call_operand.hbm [shape: f32[8,128], index: 4, kind: output, shape index: {0}]
  %s5 = inlined_call_operand.hbm [shape: f32[1,128], index: 5, kind: output, shape index: {1}]
  %6 = xla_tuple %s4, %s5
  %s7 = sld [smem:[#allocation0]]
  $region38: #{tpu_custom_call.1} parent=0
    _
  %s9 = ssub.s32 1, %s7
  %s10 = scalar_select 0, %s9, %s7
  $region1: #{tpu_custom_call.1} parent=0
    #allocation2 [shape = 'u8[4096]{0}', space=vmem, size = 0x1000, scoped, tag = 'input window, operand 3, single buffered']
    #allocation3 [shape = 's32[1]{0}', space=sflag, size = 0x4, scoped, tag = 'scoped memory for tpu_custom_call.1']
    #allocation4 [shape = 's32[1]{0}', space=sflag, size = 0x4, scoped, tag = 'scoped memory for tpu_custom_call.1']
    #allocation5 [shape = 'u8[4096]{0}', space=vmem, size = 0x1000, scoped, tag = 'output window, operand 0, single buffered']
    #allocation6 [shape = 'u8[512]{0}', space=vmem, size = 0x400, scoped, tag = 'output window, operand 1, single buffered']
    #allocation7 [shape = 's32[1]{0}', space=sflag, size = 0x4, scoped, tag = 'scoped memory for tpu_custom_call.1']
    %11 = vsyncpa [#allocation3], 0
    %12 = vsyncpa [#allocation4], 0
    %13 = vsyncpa [#allocation7], 0
    // Predicated region
    $region2: #{tpu_custom_call.1} parent=1 // pred_check
      _
    $region3: #{tpu_custom_call.1} parent=1 // pred_check_branch
      %15 = sbr.rel (0) target = $region5
    $region4: #{tpu_custom_call.1} parent=1 // pred_region
      _
    $region5: #{tpu_custom_call.1} parent=1 // pred_fallthru
      _
    // Predicated region
    $region6: #{tpu_custom_call.1} parent=1 // pred_check
      _
    $region7: #{tpu_custom_call.1} parent=1 // pred_check_branch
      %17 = sbr.rel (0) target = $region9
    $region8: #{tpu_custom_call.1} parent=1 // pred_region
      _
    $region9: #{tpu_custom_call.1} parent=1 // pred_fallthru
      _
    // Predicated region
    $region10: #{tpu_custom_call.1} parent=1 // pred_check
      _
    $region11: #{tpu_custom_call.1} parent=1 // pred_check_branch
      %19 = sbr.rel (0) target = $region13
    $region12: #{tpu_custom_call.1} parent=1 // pred_region
      _
    $region13: #{tpu_custom_call.1} parent=1 // pred_fallthru
      _
    // Predicated region
    $region14: #{tpu_custom_call.1} parent=1 // pred_check
      _
    $region15: #{tpu_custom_call.1} parent=1 // pred_check_branch
      %21 = sbr.rel (0) target = $region17
    $region16: #{tpu_custom_call.1} parent=1 // pred_region
      %23 = vsyncadd [#allocation3], 0
      %s25 = sshll.u32 %s3, 4
      %s26 = int_to_ptr.hbm [resolvable:$true] %s25
      %s27 = sshll.u32 [#allocation2], 4
      %s28 = int_to_ptr.vmem [resolvable:$true] %s27
      %30 = dma.hbm_to_vmem [thread:$0]  %s26, 128, %s28, [#allocation3]
    $region17: #{tpu_custom_call.1} parent=1 // pred_fallthru
      _
    // Predicated region
    $region18: #{tpu_custom_call.1} parent=1 // pred_check
      _
    $region19: #{tpu_custom_call.1} parent=1 // pred_check_branch
      %32 = sbr.rel (0) target = $region21
    $region20: #{tpu_custom_call.1} parent=1 // pred_region
      %34 = dma.done [#allocation3], 128
    $region21: #{tpu_custom_call.1} parent=1 // pred_fallthru
      _
    %v35 = vld [vmem:[%s0] sm:$0xff]
    %v36 = vld [vmem:[%s0 + $0x8] sm:$0xff]
    %v37 = vld [vmem:[%s0 + $0x10] sm:$0xff]
    %v38 = vld [vmem:[%s0 + $0x18] sm:$0xff]
    %v39 = vld [vmem:[%s0 + $0x20] sm:$0xff]
    %v40 = vld [vmem:[%s0 + $0x28] sm:$0xff]
    %v41 = vld [vmem:[%s0 + $0x30] sm:$0xff]
    %v42 = vld [vmem:[%s0 + $0x38] sm:$0xff]
    %v43 = vld [vmem:[%s0 + $0x40] sm:$0xff]
    %v44 = vld [vmem:[%s0 + $0x48] sm:$0xff]
    %v45 = vld [vmem:[%s0 + $0x50] sm:$0xff]
    %v46 = vld [vmem:[%s0 + $0x58] sm:$0xff]
    %v47 = vld [vmem:[%s0 + $0x60] sm:$0xff]
    %v48 = vld [vmem:[%s0 + $0x68] sm:$0xff]
    %v49 = vld [vmem:[%s0 + $0x70] sm:$0xff]
    %v50 = vld [vmem:[%s0 + $0x78] sm:$0xff]
    %v51 = vld [vmem:[%s2] sm:$0xff]
    %v52 = vld [vmem:[%s2 + $0x8] sm:$0xff]
    %v53 = vld [vmem:[%s2 + $0x10] sm:$0xff]
    %v54 = vld [vmem:[%s2 + $0x18] sm:$0xff]
    %v55 = vld [vmem:[#allocation2] sm:$0x1]
    %v56 = vperm.slane %v55, 0
    %vm57 = vcmask 261120
    %v59 = vsel %vm57, %v35, 0
    %v62 = vsel %vm57, %v36, 0
    %v65 = vsel %vm57, %v37, 0
    %v68 = vsel %vm57, %v38, 0
    %v71 = vsel %vm57, %v39, 0
    %v74 = vsel %vm57, %v40, 0
    %v77 = vsel %vm57, %v41, 0
    %v80 = vsel %vm57, %v42, 0
    %v83 = vsel %vm57, %v43, 0
    %v86 = vsel %vm57, %v44, 0
    %v89 = vsel %vm57, %v45, 0
    %v92 = vsel %vm57, %v46, 0
    %v95 = vsel %vm57, %v47, 0
    %v98 = vsel %vm57, %v48, 0
    %v101 = vsel %vm57, %v49, 0
    %v104 = vsel %vm57, %v50, 0
    %106 = vmatpush.msra.mxu0 0.0
    %107 = vmatpush.msra.mxu0 0.0
    %108 = vmatpush.msra.mxu0 0.0
    %109 = vmatpush.msra.mxu0 0.0
    %110 = vmatpush.msra.mxu0 0.0
    %111 = vmatpush.msra.mxu0 0.0
    %112 = vmatpush.msra.mxu0 0.0
    %113 = vmatpush.msra.mxu0 0.0
    %114 = vmatpush.msra.mxu0 0.0
    %115 = vmatpush.msra.mxu0 0.0
    %116 = vmatpush.msra.mxu0 0.0
    %117 = vmatpush.msra.mxu0 0.0
    %118 = vmatpush.msra.mxu0 %v54
    %119 = vmatpush.msra.mxu0 %v53
    %120 = vmatpush.msra.mxu0 %v52
    %121 = vmatpush.msra.mxu0 %v51
    %122 = vmatmul.f32.gmra.mxu0 %v59
    %v123 = vpop.f32.mrf.mxu0
    %v124 = vadd.f32 %v56, %v123
    %125 = vmatmul.f32.gmra.mxu0 %v62
    %v126 = vpop.f32.mrf.mxu0
    %v127 = vadd.f32 %v56, %v126
    %128 = vmatmul.f32.gmra.mxu0 %v65
    %v129 = vpop.f32.mrf.mxu0
    %v130 = vadd.f32 %v56, %v129
    %131 = vmatmul.f32.gmra.mxu0 %v68
    %v132 = vpop.f32.mrf.mxu0
    %v133 = vadd.f32 %v56, %v132
    %134 = vmatmul.f32.gmra.mxu0 %v71
    %v135 = vpop.f32.mrf.mxu0
    %v136 = vadd.f32 %v56, %v135
    %137 = vmatmul.f32.gmra.mxu0 %v74
    %v138 = vpop.f32.mrf.mxu0
    %v139 = vadd.f32 %v56, %v138
    %140 = vmatmul.f32.gmra.mxu0 %v77
    %v141 = vpop.f32.mrf.mxu0
    %v142 = vadd.f32 %v56, %v141
    %143 = vmatmul.f32.gmra.mxu0 %v80
    %v144 = vpop.f32.mrf.mxu0
    %v145 = vadd.f32 %v56, %v144
    %146 = vmatmul.f32.gmra.mxu0 %v83
    %v147 = vpop.f32.mrf.mxu0
    %v148 = vadd.f32 %v56, %v147
    %149 = vmatmul.f32.gmra.mxu0 %v86
    %v150 = vpop.f32.mrf.mxu0
    %v151 = vadd.f32 %v56, %v150
    %152 = vmatmul.f32.gmra.mxu0 %v89
    %v153 = vpop.f32.mrf.mxu0
    %v154 = vadd.f32 %v56, %v153
    %155 = vmatmul.f32.gmra.mxu0 %v92
    %v156 = vpop.f32.mrf.mxu0
    %v157 = vadd.f32 %v56, %v156
    %158 = vmatmul.f32.gmra.mxu0 %v95
    %v159 = vpop.f32.mrf.mxu0
    %v160 = vadd.f32 %v56, %v159
    %161 = vmatmul.f32.gmra.mxu0 %v98
    %v162 = vpop.f32.mrf.mxu0
    %v163 = vadd.f32 %v56, %v162
    %164 = vmatmul.f32.gmra.mxu0 %v101
    %v165 = vpop.f32.mrf.mxu0
    %v166 = vadd.f32 %v56, %v165
    %167 = vmatmul.f32.gmra.mxu0 %v104
    %v168 = vpop.f32.mrf.mxu0
    %v169 = vadd.f32 %v56, %v168
    %170 = vdwg.mxu0
    %v171 = vtanh.pop %v124
    %v172 = vtanh.pop %v127
    %v173 = vtanh.pop %v130
    %v174 = vtanh.pop %v133
    %v175 = vtanh.pop %v136
    %v176 = vtanh.pop %v139
    %v177 = vtanh.pop %v142
    %v178 = vtanh.pop %v145
    %v179 = vtanh.pop %v148
    %v180 = vtanh.pop %v151
    %v181 = vtanh.pop %v154
    %v182 = vtanh.pop %v157
    %v183 = vtanh.pop %v160
    %v184 = vtanh.pop %v163
    %v185 = vtanh.pop %v166
    %v186 = vtanh.pop %v169
    %v187 = vld [vmem:[%s2 + $0x20] sm:$0xff]
    %v188 = vld [vmem:[%s2 + $0x28] sm:$0xff]
    %v189 = vld [vmem:[%s2 + $0x30] sm:$0xff]
    %v190 = vld [vmem:[%s2 + $0x38] sm:$0xff]
    %v191 = vld [vmem:[%s2 + $0x40] sm:$0xff]
    %v192 = vld [vmem:[%s2 + $0x48] sm:$0xff]
    %v193 = vld [vmem:[%s2 + $0x50] sm:$0xff]
    %v194 = vld [vmem:[%s2 + $0x58] sm:$0xff]
    %v195 = vld [vmem:[#allocation2 + $0x1] sm:$0x1]
    %v196 = vperm.slane %v195, 0
    %vm197 = vcmask 523264
    %v199 = vsel %vm197, %v171, 0
    %v202 = vsel %vm197, %v172, 0
    %v205 = vsel %vm197, %v173, 0
    %v208 = vsel %vm197, %v174, 0
    %v211 = vsel %vm197, %v175, 0
    %v214 = vsel %vm197, %v176, 0
    %v217 = vsel %vm197, %v177, 0
    %v220 = vsel %vm197, %v178, 0
    %v223 = vsel %vm197, %v179, 0
    %v226 = vsel %vm197, %v180, 0
    %v229 = vsel %vm197, %v181, 0
    %v232 = vsel %vm197, %v182, 0
    %v235 = vsel %vm197, %v183, 0
    %v238 = vsel %vm197, %v184, 0
    %v241 = vsel %vm197, %v185, 0
    %v244 = vsel %vm197, %v186, 0
    %246 = vmatpush.msra.mxu0 0.0
    %247 = vmatpush.msra.mxu0 0.0
    %248 = vmatpush.msra.mxu0 0.0
    %249 = vmatpush.msra.mxu0 0.0
    %250 = vmatpush.msra.mxu0 0.0
    %251 = vmatpush.msra.mxu0 0.0
    %252 = vmatpush.msra.mxu0 0.0
    %253 = vmatpush.msra.mxu0 0.0
    %254 = vmatpush.msra.mxu0 %v194
    %255 = vmatpush.msra.mxu0 %v193
    %256 = vmatpush.msra.mxu0 %v192
    %257 = vmatpush.msra.mxu0 %v191
    %258 = vmatpush.msra.mxu0 %v190
    %259 = vmatpush.msra.mxu0 %v189
    %260 = vmatpush.msra.mxu0 %v188
    %261 = vmatpush.msra.mxu0 %v187
    %262 = vmatmul.f32.gmra.mxu0 %v199
    %v263 = vpop.f32.mrf.mxu0
    %v264 = vadd.f32 %v196, %v263
    %265 = vmatmul.f32.gmra.mxu0 %v202
    %v266 = vpop.f32.mrf.mxu0
    %v267 = vadd.f32 %v196, %v266
    %268 = vmatmul.f32.gmra.mxu0 %v205
    %v269 = vpop.f32.mrf.mxu0
    %v270 = vadd.f32 %v196, %v269
    %271 = vmatmul.f32.gmra.mxu0 %v208
    %v272 = vpop.f32.mrf.mxu0
    %v273 = vadd.f32 %v196, %v272
    %274 = vmatmul.f32.gmra.mxu0 %v211
    %v275 = vpop.f32.mrf.mxu0
    %v276 = vadd.f32 %v196, %v275
    %277 = vmatmul.f32.gmra.mxu0 %v214
    %v278 = vpop.f32.mrf.mxu0
    %v279 = vadd.f32 %v196, %v278
    %280 = vmatmul.f32.gmra.mxu0 %v217
    %v281 = vpop.f32.mrf.mxu0
    %v282 = vadd.f32 %v196, %v281
    %283 = vmatmul.f32.gmra.mxu0 %v220
    %v284 = vpop.f32.mrf.mxu0
    %v285 = vadd.f32 %v196, %v284
    %286 = vmatmul.f32.gmra.mxu0 %v223
    %v287 = vpop.f32.mrf.mxu0
    %v288 = vadd.f32 %v196, %v287
    %289 = vmatmul.f32.gmra.mxu0 %v226
    %v290 = vpop.f32.mrf.mxu0
    %v291 = vadd.f32 %v196, %v290
    %292 = vmatmul.f32.gmra.mxu0 %v229
    %v293 = vpop.f32.mrf.mxu0
    %v294 = vadd.f32 %v196, %v293
    %295 = vmatmul.f32.gmra.mxu0 %v232
    %v296 = vpop.f32.mrf.mxu0
    %v297 = vadd.f32 %v196, %v296
    %298 = vmatmul.f32.gmra.mxu0 %v235
    %v299 = vpop.f32.mrf.mxu0
    %v300 = vadd.f32 %v196, %v299
    %301 = vmatmul.f32.gmra.mxu0 %v238
    %v302 = vpop.f32.mrf.mxu0
    %v303 = vadd.f32 %v196, %v302
    %304 = vmatmul.f32.gmra.mxu0 %v241
    %v305 = vpop.f32.mrf.mxu0
    %v306 = vadd.f32 %v196, %v305
    %307 = vmatmul.f32.gmra.mxu0 %v244
    %v308 = vpop.f32.mrf.mxu0
    %v309 = vadd.f32 %v196, %v308
    %310 = vdwg.mxu0
    %v311 = vtanh.pop %v264
    %v312 = vtanh.pop %v267
    %v313 = vtanh.pop %v270
    %v314 = vtanh.pop %v273
    %v315 = vtanh.pop %v276
    %v316 = vtanh.pop %v279
    %v317 = vtanh.pop %v282
    %v318 = vtanh.pop %v285
    %v319 = vtanh.pop %v288
    %v320 = vtanh.pop %v291
    %v321 = vtanh.pop %v294
    %v322 = vtanh.pop %v297
    %v323 = vtanh.pop %v300
    %v324 = vtanh.pop %v303
    %v325 = vtanh.pop %v306
    %v326 = vtanh.pop %v309
    %v327 = vld [vmem:[%s2 + $0x60] sm:$0xff]
    %v328 = vld [vmem:[%s2 + $0x68] sm:$0xff]
    %v329 = vld [vmem:[%s2 + $0x70] sm:$0xff]
    %v330 = vld [vmem:[%s2 + $0x78] sm:$0xff]
    %v331 = vld [vmem:[%s2 + $0x80] sm:$0xff]
    %v332 = vld [vmem:[%s2 + $0x88] sm:$0xff]
    %v333 = vld [vmem:[%s2 + $0x90] sm:$0xff]
    %v334 = vld [vmem:[%s2 + $0x98] sm:$0xff]
    %v335 = vld [vmem:[#allocation2 + $0x2] sm:$0x1]
    %v336 = vperm.slane %v335, 0
    %v338 = vsel %vm197, %v311, 0
    %v341 = vsel %vm197, %v312, 0
    %v344 = vsel %vm197, %v313, 0
    %v347 = vsel %vm197, %v314, 0
    %v350 = vsel %vm197, %v315, 0
    %v353 = vsel %vm197, %v316, 0
    %v356 = vsel %vm197, %v317, 0
    %v359 = vsel %vm197, %v318, 0
    %v362 = vsel %vm197, %v319, 0
    %v365 = vsel %vm197, %v320, 0
    %v368 = vsel %vm197, %v321, 0
    %v371 = vsel %vm197, %v322, 0
    %v374 = vsel %vm197, %v323, 0
    %v377 = vsel %vm197, %v324, 0
    %v380 = vsel %vm197, %v325, 0
    %v383 = vsel %vm197, %v326, 0
    %385 = vmatpush.msra.mxu0 0.0
    %386 = vmatpush.msra.mxu0 0.0
    %387 = vmatpush.msra.mxu0 0.0
    %388 = vmatpush.msra.mxu0 0.0
    %389 = vmatpush.msra.mxu0 0.0
    %390 = vmatpush.msra.mxu0 0.0
    %391 = vmatpush.msra.mxu0 0.0
    %392 = vmatpush.msra.mxu0 0.0
    %393 = vmatpush.msra.mxu0 %v334
    %394 = vmatpush.msra.mxu0 %v333
    %395 = vmatpush.msra.mxu0 %v332
    %396 = vmatpush.msra.mxu0 %v331
    %397 = vmatpush.msra.mxu0 %v330
    %398 = vmatpush.msra.mxu0 %v329
    %399 = vmatpush.msra.mxu0 %v328
    %400 = vmatpush.msra.mxu0 %v327
    %401 = vmatmul.f32.gmra.mxu0 %v338
    %v402 = vpop.f32.mrf.mxu0
    %v403 = vadd.f32 %v336, %v402
    %404 = vmatmul.f32.gmra.mxu0 %v341
    %v405 = vpop.f32.mrf.mxu0
    %v406 = vadd.f32 %v336, %v405
    %407 = vmatmul.f32.gmra.mxu0 %v344
    %v408 = vpop.f32.mrf.mxu0
    %v409 = vadd.f32 %v336, %v408
    %410 = vmatmul.f32.gmra.mxu0 %v347
    %v411 = vpop.f32.mrf.mxu0
    %v412 = vadd.f32 %v336, %v411
    %413 = vmatmul.f32.gmra.mxu0 %v350
    %v414 = vpop.f32.mrf.mxu0
    %v415 = vadd.f32 %v336, %v414
    %416 = vmatmul.f32.gmra.mxu0 %v353
    %v417 = vpop.f32.mrf.mxu0
    %v418 = vadd.f32 %v336, %v417
    %419 = vmatmul.f32.gmra.mxu0 %v356
    %v420 = vpop.f32.mrf.mxu0
    %v421 = vadd.f32 %v336, %v420
    %422 = vmatmul.f32.gmra.mxu0 %v359
    %v423 = vpop.f32.mrf.mxu0
    %v424 = vadd.f32 %v336, %v423
    %425 = vmatmul.f32.gmra.mxu0 %v362
    %v426 = vpop.f32.mrf.mxu0
    %v427 = vadd.f32 %v336, %v426
    %428 = vmatmul.f32.gmra.mxu0 %v365
    %v429 = vpop.f32.mrf.mxu0
    %v430 = vadd.f32 %v336, %v429
    %431 = vmatmul.f32.gmra.mxu0 %v368
    %v432 = vpop.f32.mrf.mxu0
    %v433 = vadd.f32 %v336, %v432
    %434 = vmatmul.f32.gmra.mxu0 %v371
    %v435 = vpop.f32.mrf.mxu0
    %v436 = vadd.f32 %v336, %v435
    %437 = vmatmul.f32.gmra.mxu0 %v374
    %v438 = vpop.f32.mrf.mxu0
    %v439 = vadd.f32 %v336, %v438
    %440 = vmatmul.f32.gmra.mxu0 %v377
    %v441 = vpop.f32.mrf.mxu0
    %v442 = vadd.f32 %v336, %v441
    %443 = vmatmul.f32.gmra.mxu0 %v380
    %v444 = vpop.f32.mrf.mxu0
    %v445 = vadd.f32 %v336, %v444
    %446 = vmatmul.f32.gmra.mxu0 %v383
    %v447 = vpop.f32.mrf.mxu0
    %v448 = vadd.f32 %v336, %v447
    %449 = vdwg.mxu0
    %450 = vxpose.xlu0.b32.start [1/16] %v403, 128
    %451 = vxpose.xlu0.b32.cont [2/16] %v406, 128
    %452 = vxpose.xlu0.b32.cont [3/16] %v409, 128
    %453 = vxpose.xlu0.b32.cont [4/16] %v412, 128
    %454 = vxpose.xlu0.b32.cont [5/16] %v415, 128
    %455 = vxpose.xlu0.b32.cont [6/16] %v418, 128
    %456 = vxpose.xlu0.b32.cont [7/16] %v421, 128
    %457 = vxpose.xlu0.b32.cont [8/16] %v424, 128
    %458 = vxpose.xlu0.b32.cont [9/16] %v427, 128
    %459 = vxpose.xlu0.b32.cont [10/16] %v430, 128
    %460 = vxpose.xlu0.b32.cont [11/16] %v433, 128
    %461 = vxpose.xlu0.b32.cont [12/16] %v436, 128
    %462 = vxpose.xlu0.b32.cont [13/16] %v439, 128
    %463 = vxpose.xlu0.b32.cont [14/16] %v442, 128
    %464 = vxpose.xlu0.b32.cont [15/16] %v445, 128
    %465 = vxpose.xlu0.b32.end [16/16] %v448, 128
    %v466 = vpop.trf.xlu0
    %v467 = vpop.trf.xlu0
    %v468 = vpop.trf.xlu0
    %v469 = vpop.trf.xlu0
    %v470 = vpop.trf.xlu0
    %v471 = vpop.trf.xlu0
    %v472 = vpop.trf.xlu0
    %v473 = vpop.trf.xlu0
    %v474 = vpop.trf.xlu0
    %v475 = vpop.trf.xlu0
    %v476 = vpop.trf.xlu0
    %v477 = vpop.trf.xlu0
    %v478 = vpop.trf.xlu0
    %v479 = vpop.trf.xlu0
    %v480 = vpop.trf.xlu0
    %v481 = vpop.trf.xlu0
    %v482 = vrot.slane %v466, 4
    %v483 = vmax.f32 %v466, %v482
    %v484 = vrot.slane %v483, 2
    %v485 = vmax.f32 %v483, %v484
    %v486 = vrot.slane %v485, 1
    %v487 = vmax.f32 %v485, %v486
    %v488 = vsub.f32 %v466, %v487
    %v489 = vmul.f32 %v488, 1.442695
    %v490 = vpow.pop %v489
    %v491 = vrot.slane %v490, 4
    %v492 = vadd.f32 %v490, %v491
    %v493 = vrot.slane %v492, 2
    %v494 = vadd.f32 %v492, %v493
    %v495 = vrot.slane %v494, 1
    %v496 = vadd.f32 %v494, %v495
    %v497 = vlog2.pop %v496
    %v498 = vmul.f32 %v497, 0.6931472
    %v499 = vadd.f32 %v487, %v498
    %v500 = vld [vmem:[%s1] sm:$0x1]
    %v501 = vlaneseq
    %v502 = vshrl.u32 %v501, 7
    %v503 = vperm.slane %v500, 0
    %vm504 = vcmp.eq.s32.totalorder %v502, %v503
    %v505 = vsel %vm504, %v466, 0.0
    %v506 = vrot.slane %v505, 4
    %v507 = vadd.f32 %v505, %v506
    %v508 = vrot.slane %v507, 2
    %v509 = vadd.f32 %v507, %v508
    %v510 = vrot.slane %v509, 1
    %v511 = vadd.f32 %v509, %v510
    %512 = vst [vmem:[#allocation5] sm:$0xff] %v466
    %v513 = vsub.f32 %v511, %v499
    %514 = vst [vmem:[#allocation6] sm:$0x1] %v513
    // Predicated region
    $region22: #{tpu_custom_call.1} parent=1 // pred_check
      _
    $region23: #{tpu_custom_call.1} parent=1 // pred_check_branch
      %516 = sbr.rel (0) target = $region25
    $region24: #{tpu_custom_call.1} parent=1 // pred_region
      %518 = vsyncadd [#allocation4], 0
      %s520 = sshll.u32 [#allocation5], 4
      %s521 = int_to_ptr.vmem [resolvable:$true] %s520
      %s522 = sshll.u32 %s4, 4
      %s523 = int_to_ptr.hbm [resolvable:$true] %s522
      %525 = dma.vmem_to_hbm [thread:$0]  %s521, 128, %s523, [#allocation4]
    $region25: #{tpu_custom_call.1} parent=1 // pred_fallthru
      _
    // Predicated region
    $region26: #{tpu_custom_call.1} parent=1 // pred_check
      _
    $region27: #{tpu_custom_call.1} parent=1 // pred_check_branch
      %527 = sbr.rel (0) target = $region29
    $region28: #{tpu_custom_call.1} parent=1 // pred_region
      %529 = vsyncadd [#allocation7], 0
      %s531 = sshll.u32 [#allocation6], 4
      %s532 = int_to_ptr.vmem [resolvable:$true] %s531
      %s533 = sshll.u32 %s5, 4
      %s534 = int_to_ptr.hbm [resolvable:$true] %s533
      %536 = dma.vmem_to_hbm [thread:$0]  %s532, 16, %s534, [#allocation7]
    $region29: #{tpu_custom_call.1} parent=1 // pred_fallthru
      _
    // Predicated region
    $region30: #{tpu_custom_call.1} parent=1 // pred_check
      _
    $region31: #{tpu_custom_call.1} parent=1 // pred_check_branch
      %538 = sbr.rel (0) target = $region33
    $region32: #{tpu_custom_call.1} parent=1 // pred_region
      %540 = dma.done [#allocation4], 128
    $region33: #{tpu_custom_call.1} parent=1 // pred_fallthru
      _
    // Predicated region
    $region34: #{tpu_custom_call.1} parent=1 // pred_check
      _
    $region35: #{tpu_custom_call.1} parent=1 // pred_check_branch
      %542 = sbr.rel (0) target = $region37
    $region36: #{tpu_custom_call.1} parent=1 // pred_region
      %544 = dma.done [#allocation7], 16
    $region37: #{tpu_custom_call.1} parent=1 // pred_fallthru
      _
    %545 = vsyncpa [#allocation3], 1
    %546 = vsyncpa [#allocation4], 1
    %547 = vsyncpa [#allocation7], 1

</llo_original>
